<compile_context>
chip_gen: v5e
topology: v5e:2x2
jax: 0.10.0
libtpu: 0.0.40
codegen_flags: <defaults>
</compile_context>

<pallas_src>
import functools

import numpy as np
import jax
import jax.numpy as jnp
from jax import lax
from jax.experimental import pallas as pl
from jax.experimental.pallas import tpu as pltpu

_MIB = 1024 * 1024


def _round_up(x: int, m: int) -> int:
    return -(-x // m) * m


@functools.lru_cache(maxsize=None)
def _pooling_tables(n: int, d: int, d_pad: int, n_rows: int):
    """Cached bf16 0/1 indicator matrix (n_rows, d_pad) and f32 (1, d_pad) scale."""
    w = np.zeros((n_rows, d_pad), dtype=np.float32)
    scale = np.ones((1, d_pad), dtype=np.float32)
    for j in range(d):
        start = (j * n) // d
        end = -((-(j + 1) * n) // d)  # ceil((j+1)*N/D)
        w[start:end, j] = 1.0
        scale[0, j] = 1.0 / float(end - start)
    # 0/1 is exact in bf16 -> half the HBM traffic / VMEM footprint of f32.
    return jnp.asarray(w, dtype=jnp.bfloat16), jnp.asarray(scale, dtype=jnp.float32)


def _make_kernel(n, tk, nk, has_k_rem, w_resident, acc_in_out, compute_dtype):
    last_k = nk - 1

    def kernel(x_ref, w_ref, scale_ref, o_ref, *scratch):
        acc_ref = o_ref if acc_in_out else scratch[0]
        k = pl.program_id(1)

        @pl.when(k == 0)
        def _init():
            acc_ref[...] = jnp.zeros_like(acc_ref)

        def w_tile():
            if w_resident:
                start = pl.multiple_of(k * tk, tk)
                w = w_ref[pl.ds(start, tk), :]
            else:
                w = w_ref[...]
            # bf16 0/1 -> compute dtype cast is exact.
            return w.astype(compute_dtype)

        def accumulate(x):
            acc_ref[...] += jnp.dot(
                x.astype(compute_dtype), w_tile(),
                preferred_element_type=jnp.float32)

        if has_k_rem:
            # Mask only on the final K tile (OOB VMEM contents are garbage,
            # possibly NaN); all other tiles take the plain-dot fast path.
            if nk > 1:
                @pl.when(k != last_k)
                def _full():
                    accumulate(x_ref[...])

            @pl.when(k == last_k)
            def _masked():
                x = x_ref[...]
                col = last_k * tk + lax.broadcasted_iota(jnp.int32, x.shape, 1)
                accumulate(jnp.where(col < n, x, jnp.zeros_like(x)))
        else:
            accumulate(x_ref[...])

        @pl.when(k == last_k)
        def _epilogue():
            # Per-column 1/window_len scale (f32) and cast fused into the
            # final write -> no separate post-kernel convert pass.
            o_ref[...] = (acc_ref[...] * scale_ref[...]).astype(o_ref.dtype)

    return kernel


def mean_mapper(features: jax.Array, preprocessing_dim: int, *,
                tk: int = 1024, tm_max: int = 512,
                use_bf16_compute: bool = False) -> jax.Array:
    """Pallas implementation of MeanMapper.forward.

    use_bf16_compute=True casts f32 features to bf16 for the matmul (v5e MXU
    fast path); it is a precision tradeoff and off by default.
    """
    b = features.shape[0]
    x = features.reshape(b, -1)          # keep native dtype (no host upcast)
    n = x.shape[1]
    d = int(preprocessing_dim)
    out_dtype = x.dtype

    d_pad = _round_up(d, 128)            # lane-dense output / MXU N fill
    tk = min(tk, _round_up(n, 128))      # don't over-read tiny N
    nk = -(-n // tk)
    has_k_rem = (n % tk) != 0
    n_rows = nk * tk

    # Batch (M) tiling: full-dim block for tiny B; otherwise split into >= 2
    # tiles (keeps both v7x TensorCores busy via the "parallel" M axis).
    if b <= 8:
        tm = b
    else:
        tm = min(tm_max, _round_up(-(-b // 2), 8))
    grid_m = -(-b // tm)

    if use_bf16_compute or x.dtype == jnp.bfloat16:
        compute_dtype = jnp.bfloat16
    else:
        compute_dtype = jnp.float32

    acc_in_out = (jnp.dtype(out_dtype) == jnp.dtype(jnp.float32))

    w, scale = _pooling_tables(n, d, d_pad, n_rows)

    # VMEM working-set estimate (double-buffered inputs/outputs) -> decide
    # whether W can live fully VMEM-resident, and size vmem_limit_bytes.
    x_b = jnp.dtype(x.dtype).itemsize
    o_b = jnp.dtype(out_dtype).itemsize
    base = (2 * tm * tk * x_b            # x tiles
            + 2 * tm * d_pad * o_b       # output block
            + 2 * 8 * d_pad * 4)         # scale row (sublane-padded)
    if not acc_in_out:
        base += tm * d_pad * 4           # f32 scratch accumulator
    w_resident_bytes = 2 * n_rows * d_pad * 2   # full bf16 W, double-buffered
    w_streamed_bytes = 2 * tk * d_pad * 2
    w_resident = (base + w_resident_bytes) <= 44 * _MIB   # safe on v7x 64 MiB
    ws = base + (w_resident_bytes if w_resident else w_streamed_bytes)
    vmem_limit = int(min(max(32 * _MIB, ws + 4 * _MIB), 112 * _MIB))

    if w_resident:
        # Constant index map -> DMA'd from HBM once for the whole call.
        w_spec = pl.BlockSpec((n_rows, d_pad), lambda i, k: (0, 0))
    else:
        w_spec = pl.BlockSpec((tk, d_pad), lambda i, k: (k, 0))

    scratch_shapes = [] if acc_in_out else [pltpu.VMEM((tm, d_pad), jnp.float32)]

    cost = pl.CostEstimate(
        flops=2 * b * n_rows * d_pad,
        transcendentals=0,
        bytes_accessed=b * n * x_b + n_rows * d_pad * 2 + b * d_pad * o_b)

    out = pl.pallas_call(
        _make_kernel(n, tk, nk, has_k_rem, w_resident, acc_in_out, compute_dtype),
        out_shape=jax.ShapeDtypeStruct((b, d_pad), out_dtype),
        grid_spec=pltpu.PrefetchScalarGridSpec(
            num_scalar_prefetch=0,
            grid=(grid_m, nk),                                   # reduction last
            in_specs=[
                pl.BlockSpec((tm, tk), lambda i, k: (i, k)),     # x M/K tile
                w_spec,                                          # bf16 indicator
                pl.BlockSpec((1, d_pad), lambda i, k: (0, 0)),   # f32 column scale
            ],
            out_specs=pl.BlockSpec((tm, d_pad), lambda i, k: (i, 0)),
            scratch_shapes=scratch_shapes,
        ),
        compiler_params=pltpu.CompilerParams(
            dimension_semantics=("parallel", "arbitrary"),
            vmem_limit_bytes=vmem_limit,
        ),
        cost_estimate=cost,
    )(x, w, scale)

    if d_pad != d:
        out = out[:, :d]                 # no-op when d is already lane-aligned
    return out                           # already in features.dtype


def _reference(features: np.ndarray, preprocessing_dim: int) -> np.ndarray:
    """Pure NumPy reference matching F.adaptive_avg_pool1d semantics."""
    b = features.shape[0]
    x = features.reshape(b, -1).astype(np.float32)
    n = x.shape[1]
    d = preprocessing_dim
    out = np.zeros((b, d), dtype=np.float32)
    for j in range(d):
        start = (j * n) // d
        end = -((-(j + 1) * n) // d)
        out[:, j] = x[:, start:end].mean(axis=1)
    return out


if __name__ == "__main__":
    k1, k2, k3, k4 = jax.random.split(jax.random.PRNGKey(0), 4)

    # 1) Typical small input, non-divisible D (adaptive windows of mixed size).
    x1 = jax.random.normal(k1, (2, 4, 16, 16), dtype=jnp.float32)
    y1 = jax.block_until_ready(mean_mapper(x1, 100))
    np.testing.assert_allclose(np.asarray(y1), _reference(np.asarray(x1), 100),
                               rtol=1e-5, atol=1e-5)

    # 2) Multiple K tiles with a ragged remainder -> accumulation over the K
    #    grid axis, resident-W slicing at k>0, last-tile-only mask.
    x2 = jax.random.normal(k2, (2, 10, 16, 16), dtype=jnp.float32)   # N=2560
    y2 = jax.block_until_ready(mean_mapper(x2, 100))
    np.testing.assert_allclose(np.asarray(y2), _reference(np.asarray(x2), 100),
                               rtol=1e-5, atol=1e-5)

    # 3) B > 8 -> two M tiles (megacore split) with a partial last M tile.
    x3 = jax.random.normal(k3, (10, 4, 8, 8), dtype=jnp.float32)
    y3 = jax.block_until_ready(mean_mapper(x3, 50))
    np.testing.assert_allclose(np.asarray(y3), _reference(np.asarray(x3), 50),
                               rtol=1e-5, atol=1e-5)

    # 4) bf16 features -> f32 scratch accumulator, bf16 output written directly
    #    by the kernel (no post-kernel cast pass).
    x4 = jax.random.normal(k4, (4, 8, 8, 8), dtype=jnp.bfloat16)
    y4 = jax.block_until_ready(mean_mapper(x4, 128))
    assert y4.dtype == jnp.bfloat16
    np.testing.assert_allclose(
        np.asarray(y4.astype(jnp.float32)),
        _reference(np.asarray(x4.astype(jnp.float32)), 128),
        rtol=2e-2, atol=2e-2)

    print("KERNEL_OK")
</pallas_src>

<mosaic_0001>
module attributes {stable_mosaic.version = 11 : i64} {
  func.func @kernel(%arg0: i32, %arg1: i32, %arg2: memref<2x1024xf32, #tpu.memory_space<vmem>>, %arg3: memref<1024x128xbf16, #tpu.memory_space<vmem>>, %arg4: memref<1x128xf32, #tpu.memory_space<vmem>>, %arg5: memref<2x128xf32, #tpu.memory_space<vmem>>) attributes {dimension_semantics = [#tpu.dimension_semantics<parallel>, #tpu.dimension_semantics<arbitrary>], iteration_bounds = array<i64: 1, 1>, scalar_prefetch = 0 : i64, scratch_operands = 0 : i64, tpu.core_type = #tpu.core_type<tc>, window_params = [{transform_indices = @transform_0, window_bounds = array<i64: 2, 1024>}, {pipeline_mode = #tpu.pipeline_mode<synchronous>, transform_indices = @transform_1, window_bounds = array<i64: 1024, 128>}, {pipeline_mode = #tpu.pipeline_mode<synchronous>, transform_indices = @transform_2, window_bounds = array<i64: 1, 128>}, {transform_indices = @transform_3, window_bounds = array<i64: 2, 128>}]} {
    %c0_i32 = arith.constant 0 : i32
    %0 = arith.cmpi eq, %arg1, %c0_i32 : i32
    %1 = arith.extui %0 : i1 to i32
    %c0_i32_0 = arith.constant 0 : i32
    %2 = arith.cmpi ne, %1, %c0_i32_0 : i32
    scf.if %2 {
      %cst_9 = arith.constant 0.000000e+00 : f32
      %16 = vector.broadcast %cst_9 : f32 to vector<2x128xf32>
      %c0_10 = arith.constant 0 : index
      %c0_11 = arith.constant 0 : index
      %17 = vector.load %arg5[%c0_10, %c0_11] : memref<2x128xf32, #tpu.memory_space<vmem>>, vector<2x128xf32>
      tpu.vector_store %arg5[%c0_10, %c0_11], %16 {strides = array<i32>} : memref<2x128xf32, #tpu.memory_space<vmem>>, vector<2x128xf32>,
    } else {
    }
    %c0 = arith.constant 0 : index
    %c0_1 = arith.constant 0 : index
    %3 = vector.load %arg2[%c0, %c0_1] : memref<2x1024xf32, #tpu.memory_space<vmem>>, vector<2x1024xf32>
    %c0_2 = arith.constant 0 : index
    %c0_3 = arith.constant 0 : index
    %4 = vector.load %arg5[%c0_2, %c0_3] : memref<2x128xf32, #tpu.memory_space<vmem>>, vector<2x128xf32>
    %c1024_i32 = arith.constant 1024 : i32
    %5 = arith.muli %arg1, %c1024_i32 : i32
    %6 = tpu.assume_multiple %5, 1024 : i32
    %7 = arith.index_cast %6 : i32 to index
    %c0_4 = arith.constant 0 : index
    %8 = vector.load %arg3[%7, %c0_4] : memref<1024x128xbf16, #tpu.memory_space<vmem>>, vector<1024x128xbf16>
    %9 = arith.extf %8 : vector<1024x128xbf16> to vector<1024x128xf32>
    %cst = arith.constant dense<0.000000e+00> : vector<2x128xf32>
    %10 = tpu.matmul %3, %9, %cst {dimension_numbers = #tpu.dot_dimension_numbers<[1], [0], [0], [1], [0, 0, 1, 1], [], []>} : vector<2x1024xf32>, vector<1024x128xf32>, vector<2x128xf32> -> vector<2x128xf32>
    %11 = arith.addf %4, %10 : vector<2x128xf32>
    %c0_5 = arith.constant 0 : index
    %c0_6 = arith.constant 0 : index
    %12 = vector.load %arg5[%c0_5, %c0_6] : memref<2x128xf32, #tpu.memory_space<vmem>>, vector<2x128xf32>
    tpu.vector_store %arg5[%c0_5, %c0_6], %11 {strides = array<i32>} : memref<2x128xf32, #tpu.memory_space<vmem>>, vector<2x128xf32>,
    %c0_i32_7 = arith.constant 0 : i32
    %13 = arith.cmpi eq, %arg1, %c0_i32_7 : i32
    %14 = arith.extui %13 : i1 to i32
    %c0_i32_8 = arith.constant 0 : i32
    %15 = arith.cmpi ne, %14, %c0_i32_8 : i32
    scf.if %15 {
      %c0_9 = arith.constant 0 : index
      %c0_10 = arith.constant 0 : index
      %16 = vector.load %arg5[%c0_9, %c0_10] : memref<2x128xf32, #tpu.memory_space<vmem>>, vector<2x128xf32>
      %c0_11 = arith.constant 0 : index
      %c0_12 = arith.constant 0 : index
      %17 = vector.load %arg4[%c0_11, %c0_12] : memref<1x128xf32, #tpu.memory_space<vmem>>, vector<1x128xf32>
      %18 = vector.broadcast %17 : vector<1x128xf32> to vector<2x128xf32>
      %19 = arith.mulf %16, %18 : vector<2x128xf32>
      %c0_13 = arith.constant 0 : index
      %c0_14 = arith.constant 0 : index
      %20 = vector.load %arg5[%c0_13, %c0_14] : memref<2x128xf32, #tpu.memory_space<vmem>>, vector<2x128xf32>
      tpu.vector_store %arg5[%c0_13, %c0_14], %19 {strides = array<i32>} : memref<2x128xf32, #tpu.memory_space<vmem>>, vector<2x128xf32>,
    } else {
    }
    return
  }
  func.func @transform_0(%arg0: i32, %arg1: i32) -> (i32, i32) {
    %c0_i32 = arith.constant 0 : i32
    return %arg0, %arg1 : i32, i32
  }
  func.func @transform_1(%arg0: i32, %arg1: i32) -> (i32, i32) {
    %c0_i32 = arith.constant 0 : i32
    %c0_i32_0 = arith.constant 0 : i32
    %c0_i32_1 = arith.constant 0 : i32
    return %c0_i32, %c0_i32_0 : i32, i32
  }
  func.func @transform_2(%arg0: i32, %arg1: i32) -> (i32, i32) {
    %c0_i32 = arith.constant 0 : i32
    %c0_i32_0 = arith.constant 0 : i32
    %c0_i32_1 = arith.constant 0 : i32
    return %c0_i32, %c0_i32_0 : i32, i32
  }
  func.func @transform_3(%arg0: i32, %arg1: i32) -> (i32, i32) {
    %c0_i32 = arith.constant 0 : i32
    %c0_i32_0 = arith.constant 0 : i32
    return %arg0, %c0_i32 : i32, i32
  }
}

</mosaic_0001>

<llo_original>
// kernel: tpu_custom_call.1
$region0: #{tpu_custom_call.1}
  #allocation0 [shape = 'u32[]', space=smem, size = 0x4, offset = 0x4, fixed_abs, tag = 'smem constant byte address 0x4 - core index']
  #allocation1 [shape = 'u32[72,128]{1,0:T(1,128)}', space=vmem, size = 0x9000, scoped, tag = 'internal scratch']
  %s0 = inlined_call_operand.hbm [shape: f32[2,1024], index: 0, kind: input, shape index: {}]
  %s1 = inlined_call_operand.hbm [shape: bf16[1024,128], index: 1, kind: input, shape index: {}]
  %s2 = inlined_call_operand.vmem [shape: f32[1,128], index: 2, kind: input, shape index: {}]
  %s3 = inlined_call_operand.hbm [shape: f32[2,128], index: 3, kind: output, shape index: {}]
  %s4 = sld [smem:[#allocation0]]
  $region38: #{tpu_custom_call.1} parent=0
    _
  %s6 = ssub.s32 1, %s4
  %s7 = scalar_select 0, %s6, %s4
  $region1: #{tpu_custom_call.1} parent=0
    #allocation2 [shape = 'u8[8192]{0}', space=vmem, size = 0x2000, scoped, tag = 'input window, operand 0, single buffered']
    #allocation3 [shape = 's32[1]{0}', space=sflag, size = 0x4, scoped, tag = 'scoped memory for tpu_custom_call.1']
    #allocation4 [shape = 's32[1]{0}', space=sflag, size = 0x4, scoped, tag = 'scoped memory for tpu_custom_call.1']
    #allocation5 [shape = 'u8[262144]{0}', space=vmem, size = 0x40000, scoped, tag = 'input window, operand 1, single buffered']
    #allocation6 [shape = 's32[1]{0}', space=sflag, size = 0x4, scoped, tag = 'scoped memory for tpu_custom_call.1']
    #allocation7 [shape = 'u8[1024]{0}', space=vmem, size = 0x400, scoped, tag = 'output window, operand 0, single buffered']
    %8 = vsyncpa [#allocation3], 0
    %9 = vsyncpa [#allocation6], 0
    %10 = vsyncpa [#allocation4], 0
    // Predicated region
    $region2: #{tpu_custom_call.1} parent=1 // pred_check
      _
    $region3: #{tpu_custom_call.1} parent=1 // pred_check_branch
      %12 = sbr.rel (0) target = $region5
    $region4: #{tpu_custom_call.1} parent=1 // pred_region
      %14 = vsyncadd [#allocation3], 0
      %s16 = sshll.u32 %s0, 4
      %s17 = int_to_ptr.hbm [resolvable:$true] %s16
      %s18 = sshll.u32 [#allocation2], 4
      %s19 = int_to_ptr.vmem [resolvable:$true] %s18
      %21 = dma.hbm_to_vmem [thread:$0]  %s17, 256, %s19, [#allocation3]
    $region5: #{tpu_custom_call.1} parent=1 // pred_fallthru
      _
    // Predicated region
    $region6: #{tpu_custom_call.1} parent=1 // pred_check
      _
    $region7: #{tpu_custom_call.1} parent=1 // pred_check_branch
      %23 = sbr.rel (0) target = $region9
    $region8: #{tpu_custom_call.1} parent=1 // pred_region
      %25 = vsyncadd [#allocation6], 0
      %s26 = sshll.u32 %s1, 4
      %s27 = int_to_ptr.hbm [resolvable:$true] %s26
      %s28 = sshll.u32 [#allocation5], 4
      %s29 = int_to_ptr.vmem [resolvable:$true] %s28
      %34 = dma.hbm_to_vmem [thread:$0]  %s27, 8192, %s29, [#allocation6], 64, 64, 4
    $region9: #{tpu_custom_call.1} parent=1 // pred_fallthru
      _
    // Predicated region
    $region10: #{tpu_custom_call.1} parent=1 // pred_check
      _
    $region11: #{tpu_custom_call.1} parent=1 // pred_check_branch
      %36 = sbr.rel (0) target = $region13
    $region12: #{tpu_custom_call.1} parent=1 // pred_region
      _
    $region13: #{tpu_custom_call.1} parent=1 // pred_fallthru
      _
    // Predicated region
    $region14: #{tpu_custom_call.1} parent=1 // pred_check
      _
    $region15: #{tpu_custom_call.1} parent=1 // pred_check_branch
      %38 = sbr.rel (0) target = $region17
    $region16: #{tpu_custom_call.1} parent=1 // pred_region
      %40 = dma.done [#allocation3], 256
    $region17: #{tpu_custom_call.1} parent=1 // pred_fallthru
      _
    // Predicated region
    $region18: #{tpu_custom_call.1} parent=1 // pred_check
      _
    $region19: #{tpu_custom_call.1} parent=1 // pred_check_branch
      %42 = sbr.rel (0) target = $region21
    $region20: #{tpu_custom_call.1} parent=1 // pred_region
      %44 = dma.done [#allocation6], 8192
    $region21: #{tpu_custom_call.1} parent=1 // pred_fallthru
      _
    %p45 = scmp.eq.s32.totalorder 0, 0
    // Predicated region
    $region22: #{tpu_custom_call.1} parent=1 // pred_check
      %p46 = pneg %p45
    $region23: #{tpu_custom_call.1} parent=1 // pred_check_branch
      %48 = sbr.rel (%p46) target = $region25
    $region24: #{tpu_custom_call.1} parent=1 // pred_region
      %49 = vst [vmem:[#allocation7] sm:$0x3] 0.0
    $region25: #{tpu_custom_call.1} parent=1 // pred_fallthru
      _
    %v50 = vld [vmem:[#allocation2] sm:$0xff]
    %v51 = vld [vmem:[#allocation2 + $0x8] sm:$0xff]
    %v52 = vld [vmem:[#allocation7] sm:$0x3]
    %s53 = smul.u32 0, 1024
    %s54 = sshra.s32 %s53, 3
    %s55 = sand.u32 %s53, 7
    %s56 = smul.addr %s54, 4
    %s57 = scalar_lea.vmem [#allocation5], %s56
    %v58 = vld [vmem:[%s57] sm:$0xf]
    %v59 = vld [vmem:[%s57 + $0x4] sm:$0xf]
    %v60 = vld [vmem:[%s57 + $0x8] sm:$0xf]
    %v61 = vld [vmem:[%s57 + $0xc] sm:$0xf]
    %v62 = vld [vmem:[%s57 + $0x10] sm:$0xf]
    %v63 = vld [vmem:[%s57 + $0x14] sm:$0xf]
    %v64 = vld [vmem:[%s57 + $0x18] sm:$0xf]
    %v65 = vld [vmem:[%s57 + $0x1c] sm:$0xf]
    %v66 = vld [vmem:[%s57 + $0x20] sm:$0xf]
    %v67 = vld [vmem:[%s57 + $0x24] sm:$0xf]
    %v68 = vld [vmem:[%s57 + $0x28] sm:$0xf]
    %v69 = vld [vmem:[%s57 + $0x2c] sm:$0xf]
    %v70 = vld [vmem:[%s57 + $0x30] sm:$0xf]
    %v71 = vld [vmem:[%s57 + $0x34] sm:$0xf]
    %v72 = vld [vmem:[%s57 + $0x38] sm:$0xf]
    %v73 = vld [vmem:[%s57 + $0x3c] sm:$0xf]
    %v74 = vld [vmem:[%s57 + $0x40] sm:$0xf]
    %v75 = vld [vmem:[%s57 + $0x44] sm:$0xf]
    %v76 = vld [vmem:[%s57 + $0x48] sm:$0xf]
    %v77 = vld [vmem:[%s57 + $0x4c] sm:$0xf]
    %v78 = vld [vmem:[%s57 + $0x50] sm:$0xf]
    %v79 = vld [vmem:[%s57 + $0x54] sm:$0xf]
    %v80 = vld [vmem:[%s57 + $0x58] sm:$0xf]
    %v81 = vld [vmem:[%s57 + $0x5c] sm:$0xf]
    %v82 = vld [vmem:[%s57 + $0x60] sm:$0xf]
    %v83 = vld [vmem:[%s57 + $0x64] sm:$0xf]
    %v84 = vld [vmem:[%s57 + $0x68] sm:$0xf]
    %v85 = vld [vmem:[%s57 + $0x6c] sm:$0xf]
    %v86 = vld [vmem:[%s57 + $0x70] sm:$0xf]
    %v87 = vld [vmem:[%s57 + $0x74] sm:$0xf]
    %v88 = vld [vmem:[%s57 + $0x78] sm:$0xf]
    %v89 = vld [vmem:[%s57 + $0x7c] sm:$0xf]
    %v90 = vld [vmem:[%s57 + $0x80] sm:$0xf]
    %v91 = vld [vmem:[%s57 + $0x84] sm:$0xf]
    %v92 = vld [vmem:[%s57 + $0x88] sm:$0xf]
    %v93 = vld [vmem:[%s57 + $0x8c] sm:$0xf]
    %v94 = vld [vmem:[%s57 + $0x90] sm:$0xf]
    %v95 = vld [vmem:[%s57 + $0x94] sm:$0xf]
    %v96 = vld [vmem:[%s57 + $0x98] sm:$0xf]
    %v97 = vld [vmem:[%s57 + $0x9c] sm:$0xf]
    %v98 = vld [vmem:[%s57 + $0xa0] sm:$0xf]
    %v99 = vld [vmem:[%s57 + $0xa4] sm:$0xf]
    %v100 = vld [vmem:[%s57 + $0xa8] sm:$0xf]
    %v101 = vld [vmem:[%s57 + $0xac] sm:$0xf]
    %v102 = vld [vmem:[%s57 + $0xb0] sm:$0xf]
    %v103 = vld [vmem:[%s57 + $0xb4] sm:$0xf]
    %v104 = vld [vmem:[%s57 + $0xb8] sm:$0xf]
    %v105 = vld [vmem:[%s57 + $0xbc] sm:$0xf]
    %v106 = vld [vmem:[%s57 + $0xc0] sm:$0xf]
    %v107 = vld [vmem:[%s57 + $0xc4] sm:$0xf]
    %v108 = vld [vmem:[%s57 + $0xc8] sm:$0xf]
    %v109 = vld [vmem:[%s57 + $0xcc] sm:$0xf]
    %v110 = vld [vmem:[%s57 + $0xd0] sm:$0xf]
    %v111 = vld [vmem:[%s57 + $0xd4] sm:$0xf]
    %v112 = vld [vmem:[%s57 + $0xd8] sm:$0xf]
    %v113 = vld [vmem:[%s57 + $0xdc] sm:$0xf]
    %v114 = vld [vmem:[%s57 + $0xe0] sm:$0xf]
    %v115 = vld [vmem:[%s57 + $0xe4] sm:$0xf]
    %v116 = vld [vmem:[%s57 + $0xe8] sm:$0xf]
    %v117 = vld [vmem:[%s57 + $0xec] sm:$0xf]
    %v118 = vld [vmem:[%s57 + $0xf0] sm:$0xf]
    %v119 = vld [vmem:[%s57 + $0xf4] sm:$0xf]
    %v120 = vld [vmem:[%s57 + $0xf8] sm:$0xf]
    %v121 = vld [vmem:[%s57 + $0xfc] sm:$0xf]
    %v122 = vld [vmem:[%s57 + $0x100] sm:$0xf]
    %v123 = vld [vmem:[%s57 + $0x104] sm:$0xf]
    %v124 = vld [vmem:[%s57 + $0x108] sm:$0xf]
    %v125 = vld [vmem:[%s57 + $0x10c] sm:$0xf]
    %v126 = vld [vmem:[%s57 + $0x110] sm:$0xf]
    %v127 = vld [vmem:[%s57 + $0x114] sm:$0xf]
    %v128 = vld [vmem:[%s57 + $0x118] sm:$0xf]
    %v129 = vld [vmem:[%s57 + $0x11c] sm:$0xf]
    %v130 = vld [vmem:[%s57 + $0x120] sm:$0xf]
    %v131 = vld [vmem:[%s57 + $0x124] sm:$0xf]
    %v132 = vld [vmem:[%s57 + $0x128] sm:$0xf]
    %v133 = vld [vmem:[%s57 + $0x12c] sm:$0xf]
    %v134 = vld [vmem:[%s57 + $0x130] sm:$0xf]
    %v135 = vld [vmem:[%s57 + $0x134] sm:$0xf]
    %v136 = vld [vmem:[%s57 + $0x138] sm:$0xf]
    %v137 = vld [vmem:[%s57 + $0x13c] sm:$0xf]
    %v138 = vld [vmem:[%s57 + $0x140] sm:$0xf]
    %v139 = vld [vmem:[%s57 + $0x144] sm:$0xf]
    %v140 = vld [vmem:[%s57 + $0x148] sm:$0xf]
    %v141 = vld [vmem:[%s57 + $0x14c] sm:$0xf]
    %v142 = vld [vmem:[%s57 + $0x150] sm:$0xf]
    %v143 = vld [vmem:[%s57 + $0x154] sm:$0xf]
    %v144 = vld [vmem:[%s57 + $0x158] sm:$0xf]
    %v145 = vld [vmem:[%s57 + $0x15c] sm:$0xf]
    %v146 = vld [vmem:[%s57 + $0x160] sm:$0xf]
    %v147 = vld [vmem:[%s57 + $0x164] sm:$0xf]
    %v148 = vld [vmem:[%s57 + $0x168] sm:$0xf]
    %v149 = vld [vmem:[%s57 + $0x16c] sm:$0xf]
    %v150 = vld [vmem:[%s57 + $0x170] sm:$0xf]
    %v151 = vld [vmem:[%s57 + $0x174] sm:$0xf]
    %v152 = vld [vmem:[%s57 + $0x178] sm:$0xf]
    %v153 = vld [vmem:[%s57 + $0x17c] sm:$0xf]
    %v154 = vld [vmem:[%s57 + $0x180] sm:$0xf]
    %v155 = vld [vmem:[%s57 + $0x184] sm:$0xf]
    %v156 = vld [vmem:[%s57 + $0x188] sm:$0xf]
    %v157 = vld [vmem:[%s57 + $0x18c] sm:$0xf]
    %v158 = vld [vmem:[%s57 + $0x190] sm:$0xf]
    %v159 = vld [vmem:[%s57 + $0x194] sm:$0xf]
    %v160 = vld [vmem:[%s57 + $0x198] sm:$0xf]
    %v161 = vld [vmem:[%s57 + $0x19c] sm:$0xf]
    %v162 = vld [vmem:[%s57 + $0x1a0] sm:$0xf]
    %v163 = vld [vmem:[%s57 + $0x1a4] sm:$0xf]
    %v164 = vld [vmem:[%s57 + $0x1a8] sm:$0xf]
    %v165 = vld [vmem:[%s57 + $0x1ac] sm:$0xf]
    %v166 = vld [vmem:[%s57 + $0x1b0] sm:$0xf]
    %v167 = vld [vmem:[%s57 + $0x1b4] sm:$0xf]
    %v168 = vld [vmem:[%s57 + $0x1b8] sm:$0xf]
    %v169 = vld [vmem:[%s57 + $0x1bc] sm:$0xf]
    %v170 = vld [vmem:[%s57 + $0x1c0] sm:$0xf]
    %v171 = vld [vmem:[%s57 + $0x1c4] sm:$0xf]
    %v172 = vld [vmem:[%s57 + $0x1c8] sm:$0xf]
    %v173 = vld [vmem:[%s57 + $0x1cc] sm:$0xf]
    %v174 = vld [vmem:[%s57 + $0x1d0] sm:$0xf]
    %v175 = vld [vmem:[%s57 + $0x1d4] sm:$0xf]
    %v176 = vld [vmem:[%s57 + $0x1d8] sm:$0xf]
    %v177 = vld [vmem:[%s57 + $0x1dc] sm:$0xf]
    %v178 = vld [vmem:[%s57 + $0x1e0] sm:$0xf]
    %v179 = vld [vmem:[%s57 + $0x1e4] sm:$0xf]
    %v180 = vld [vmem:[%s57 + $0x1e8] sm:$0xf]
    %v181 = vld [vmem:[%s57 + $0x1ec] sm:$0xf]
    %v182 = vld [vmem:[%s57 + $0x1f0] sm:$0xf]
    %v183 = vld [vmem:[%s57 + $0x1f4] sm:$0xf]
    %v184 = vld [vmem:[%s57 + $0x1f8] sm:$0xf]
    %v185 = vld [vmem:[%s57 + $0x1fc] sm:$0xf]
    %v186 = vunpack.c.l.bf16 %v58
    %v187 = vunpack.c.l.bf16 %v59
    %v188 = vunpack.c.l.bf16 %v60
    %v189 = vunpack.c.l.bf16 %v61
    %v190 = vunpack.c.l.bf16 %v62
    %v191 = vunpack.c.l.bf16 %v63
    %v192 = vunpack.c.l.bf16 %v64
    %v193 = vunpack.c.l.bf16 %v65
    %v194 = vunpack.c.l.bf16 %v66
    %v195 = vunpack.c.l.bf16 %v67
    %v196 = vunpack.c.l.bf16 %v68
    %v197 = vunpack.c.l.bf16 %v69
    %v198 = vunpack.c.l.bf16 %v70
    %v199 = vunpack.c.l.bf16 %v71
    %v200 = vunpack.c.l.bf16 %v72
    %v201 = vunpack.c.l.bf16 %v73
    %v202 = vunpack.c.l.bf16 %v74
    %v203 = vunpack.c.l.bf16 %v75
    %v204 = vunpack.c.l.bf16 %v76
    %v205 = vunpack.c.l.bf16 %v77
    %v206 = vunpack.c.l.bf16 %v78
    %v207 = vunpack.c.l.bf16 %v79
    %v208 = vunpack.c.l.bf16 %v80
    %v209 = vunpack.c.l.bf16 %v81
    %v210 = vunpack.c.l.bf16 %v82
    %v211 = vunpack.c.l.bf16 %v83
    %v212 = vunpack.c.l.bf16 %v84
    %v213 = vunpack.c.l.bf16 %v85
    %v214 = vunpack.c.l.bf16 %v86
    %v215 = vunpack.c.l.bf16 %v87
    %v216 = vunpack.c.l.bf16 %v88
    %v217 = vunpack.c.l.bf16 %v89
    %v218 = vunpack.c.l.bf16 %v90
    %v219 = vunpack.c.l.bf16 %v91
    %v220 = vunpack.c.l.bf16 %v92
    %v221 = vunpack.c.l.bf16 %v93
    %v222 = vunpack.c.l.bf16 %v94
    %v223 = vunpack.c.l.bf16 %v95
    %v224 = vunpack.c.l.bf16 %v96
    %v225 = vunpack.c.l.bf16 %v97
    %v226 = vunpack.c.l.bf16 %v98
    %v227 = vunpack.c.l.bf16 %v99
    %v228 = vunpack.c.l.bf16 %v100
    %v229 = vunpack.c.l.bf16 %v101
    %v230 = vunpack.c.l.bf16 %v102
    %v231 = vunpack.c.l.bf16 %v103
    %v232 = vunpack.c.l.bf16 %v104
    %v233 = vunpack.c.l.bf16 %v105
    %v234 = vunpack.c.l.bf16 %v106
    %v235 = vunpack.c.l.bf16 %v107
    %v236 = vunpack.c.l.bf16 %v108
    %v237 = vunpack.c.l.bf16 %v109
    %v238 = vunpack.c.l.bf16 %v110
    %v239 = vunpack.c.l.bf16 %v111
    %v240 = vunpack.c.l.bf16 %v112
    %v241 = vunpack.c.l.bf16 %v113
    %v242 = vunpack.c.l.bf16 %v114
    %v243 = vunpack.c.l.bf16 %v115
    %v244 = vunpack.c.l.bf16 %v116
    %v245 = vunpack.c.l.bf16 %v117
    %v246 = vunpack.c.l.bf16 %v118
    %v247 = vunpack.c.l.bf16 %v119
    %v248 = vunpack.c.l.bf16 %v120
    %v249 = vunpack.c.l.bf16 %v121
    %v250 = vunpack.c.l.bf16 %v122
    %v251 = vunpack.c.l.bf16 %v123
    %v252 = vunpack.c.l.bf16 %v124
    %v253 = vunpack.c.l.bf16 %v125
    %v254 = vunpack.c.l.bf16 %v126
    %v255 = vunpack.c.l.bf16 %v127
    %v256 = vunpack.c.l.bf16 %v128
    %v257 = vunpack.c.l.bf16 %v129
    %v258 = vunpack.c.l.bf16 %v130
    %v259 = vunpack.c.l.bf16 %v131
    %v260 = vunpack.c.l.bf16 %v132
    %v261 = vunpack.c.l.bf16 %v133
    %v262 = vunpack.c.l.bf16 %v134
    %v263 = vunpack.c.l.bf16 %v135
    %v264 = vunpack.c.l.bf16 %v136
    %v265 = vunpack.c.l.bf16 %v137
    %v266 = vunpack.c.l.bf16 %v138
    %v267 = vunpack.c.l.bf16 %v139
    %v268 = vunpack.c.l.bf16 %v140
    %v269 = vunpack.c.l.bf16 %v141
    %v270 = vunpack.c.l.bf16 %v142
    %v271 = vunpack.c.l.bf16 %v143
    %v272 = vunpack.c.l.bf16 %v144
    %v273 = vunpack.c.l.bf16 %v145
    %v274 = vunpack.c.l.bf16 %v146
    %v275 = vunpack.c.l.bf16 %v147
    %v276 = vunpack.c.l.bf16 %v148
    %v277 = vunpack.c.l.bf16 %v149
    %v278 = vunpack.c.l.bf16 %v150
    %v279 = vunpack.c.l.bf16 %v151
    %v280 = vunpack.c.l.bf16 %v152
    %v281 = vunpack.c.l.bf16 %v153
    %v282 = vunpack.c.l.bf16 %v154
    %v283 = vunpack.c.l.bf16 %v155
    %v284 = vunpack.c.l.bf16 %v156
    %v285 = vunpack.c.l.bf16 %v157
    %v286 = vunpack.c.l.bf16 %v158
    %v287 = vunpack.c.l.bf16 %v159
    %v288 = vunpack.c.l.bf16 %v160
    %v289 = vunpack.c.l.bf16 %v161
    %v290 = vunpack.c.l.bf16 %v162
    %v291 = vunpack.c.l.bf16 %v163
    %v292 = vunpack.c.l.bf16 %v164
    %v293 = vunpack.c.l.bf16 %v165
    %v294 = vunpack.c.l.bf16 %v166
    %v295 = vunpack.c.l.bf16 %v167
    %v296 = vunpack.c.l.bf16 %v168
    %v297 = vunpack.c.l.bf16 %v169
    %v298 = vunpack.c.l.bf16 %v170
    %v299 = vunpack.c.l.bf16 %v171
    %v300 = vunpack.c.l.bf16 %v172
    %v301 = vunpack.c.l.bf16 %v173
    %v302 = vunpack.c.l.bf16 %v174
    %v303 = vunpack.c.l.bf16 %v175
    %v304 = vunpack.c.l.bf16 %v176
    %v305 = vunpack.c.l.bf16 %v177
    %v306 = vunpack.c.l.bf16 %v178
    %v307 = vunpack.c.l.bf16 %v179
    %v308 = vunpack.c.l.bf16 %v180
    %v309 = vunpack.c.l.bf16 %v181
    %v310 = vunpack.c.l.bf16 %v182
    %v311 = vunpack.c.l.bf16 %v183
    %v312 = vunpack.c.l.bf16 %v184
    %v313 = vunpack.c.l.bf16 %v185
    %316 = vst [vmem:[#allocation1] ss:$4 sm:$0xff] %v50
    %s317 = scalar_lea.vmem [#allocation1], 32
    %318 = vst [vmem:[%s317] ss:$4 sm:$0xff] %v51
    %v319 = vld.sshfl [vmem:[#allocation1] sm:$0xff pattern:$0x73625140]
    %v320 = vld.sshfl [vmem:[#allocation1 + $0x8] sm:$0xff pattern:$0x73625140]
    %v321 = vld.sshfl [vmem:[#allocation1 + $0x10] sm:$0xff pattern:$0x73625140]
    %v322 = vld.sshfl [vmem:[#allocation1 + $0x18] sm:$0xff pattern:$0x73625140]
    %v323 = vld.sshfl [vmem:[#allocation1 + $0x20] sm:$0xff pattern:$0x73625140]
    %v324 = vld.sshfl [vmem:[#allocation1 + $0x28] sm:$0xff pattern:$0x73625140]
    %v325 = vld.sshfl [vmem:[#allocation1 + $0x30] sm:$0xff pattern:$0x73625140]
    %v326 = vld.sshfl [vmem:[#allocation1 + $0x38] sm:$0xff pattern:$0x73625140]
    %335 = vmatpush.msra.mxu0 %v201
    %336 = vmatpush.msra.mxu0 %v200
    %337 = vmatpush.msra.mxu0 %v199
    %338 = vmatpush.msra.mxu0 %v198
    %339 = vmatpush.msra.mxu0 %v197
    %340 = vmatpush.msra.mxu0 %v196
    %341 = vmatpush.msra.mxu0 %v195
    %342 = vmatpush.msra.mxu0 %v194
    %343 = vmatpush.msra.mxu0 %v193
    %344 = vmatpush.msra.mxu0 %v192
    %345 = vmatpush.msra.mxu0 %v191
    %346 = vmatpush.msra.mxu0 %v190
    %347 = vmatpush.msra.mxu0 %v189
    %348 = vmatpush.msra.mxu0 %v188
    %349 = vmatpush.msra.mxu0 %v187
    %350 = vmatpush.msra.mxu0 %v186
    %351 = vmatmul.f32.gmra.mxu0 %v319
    %v352 = vpop.f32.mrf.mxu0
    %v353 = vadd.f32 0.0, %v352
    %354 = vdwg.mxu0
    %355 = vmatpush.msra.mxu0 %v217
    %356 = vmatpush.msra.mxu0 %v216
    %357 = vmatpush.msra.mxu0 %v215
    %358 = vmatpush.msra.mxu0 %v214
    %359 = vmatpush.msra.mxu0 %v213
    %360 = vmatpush.msra.mxu0 %v212
    %361 = vmatpush.msra.mxu0 %v211
    %362 = vmatpush.msra.mxu0 %v210
    %363 = vmatpush.msra.mxu0 %v209
    %364 = vmatpush.msra.mxu0 %v208
    %365 = vmatpush.msra.mxu0 %v207
    %366 = vmatpush.msra.mxu0 %v206
    %367 = vmatpush.msra.mxu0 %v205
    %368 = vmatpush.msra.mxu0 %v204
    %369 = vmatpush.msra.mxu0 %v203
    %370 = vmatpush.msra.mxu0 %v202
    %371 = vmatmul.f32.gmra.mxu0 %v320
    %v372 = vpop.f32.mrf.mxu0
    %v373 = vadd.f32 %v353, %v372
    %374 = vdwg.mxu0
    %375 = vmatpush.msra.mxu0 %v233
    %376 = vmatpush.msra.mxu0 %v232
    %377 = vmatpush.msra.mxu0 %v231
    %378 = vmatpush.msra.mxu0 %v230
    %379 = vmatpush.msra.mxu0 %v229
    %380 = vmatpush.msra.mxu0 %v228
    %381 = vmatpush.msra.mxu0 %v227
    %382 = vmatpush.msra.mxu0 %v226
    %383 = vmatpush.msra.mxu0 %v225
    %384 = vmatpush.msra.mxu0 %v224
    %385 = vmatpush.msra.mxu0 %v223
    %386 = vmatpush.msra.mxu0 %v222
    %387 = vmatpush.msra.mxu0 %v221
    %388 = vmatpush.msra.mxu0 %v220
    %389 = vmatpush.msra.mxu0 %v219
    %390 = vmatpush.msra.mxu0 %v218
    %391 = vmatmul.f32.gmra.mxu0 %v321
    %v392 = vpop.f32.mrf.mxu0
    %v393 = vadd.f32 %v373, %v392
    %394 = vdwg.mxu0
    %395 = vmatpush.msra.mxu0 %v249
    %396 = vmatpush.msra.mxu0 %v248
    %397 = vmatpush.msra.mxu0 %v247
    %398 = vmatpush.msra.mxu0 %v246
    %399 = vmatpush.msra.mxu0 %v245
    %400 = vmatpush.msra.mxu0 %v244
    %401 = vmatpush.msra.mxu0 %v243
    %402 = vmatpush.msra.mxu0 %v242
    %403 = vmatpush.msra.mxu0 %v241
    %404 = vmatpush.msra.mxu0 %v240
    %405 = vmatpush.msra.mxu0 %v239
    %406 = vmatpush.msra.mxu0 %v238
    %407 = vmatpush.msra.mxu0 %v237
    %408 = vmatpush.msra.mxu0 %v236
    %409 = vmatpush.msra.mxu0 %v235
    %410 = vmatpush.msra.mxu0 %v234
    %411 = vmatmul.f32.gmra.mxu0 %v322
    %v412 = vpop.f32.mrf.mxu0
    %v413 = vadd.f32 %v393, %v412
    %414 = vdwg.mxu0
    %415 = vmatpush.msra.mxu0 %v265
    %416 = vmatpush.msra.mxu0 %v264
    %417 = vmatpush.msra.mxu0 %v263
    %418 = vmatpush.msra.mxu0 %v262
    %419 = vmatpush.msra.mxu0 %v261
    %420 = vmatpush.msra.mxu0 %v260
    %421 = vmatpush.msra.mxu0 %v259
    %422 = vmatpush.msra.mxu0 %v258
    %423 = vmatpush.msra.mxu0 %v257
    %424 = vmatpush.msra.mxu0 %v256
    %425 = vmatpush.msra.mxu0 %v255
    %426 = vmatpush.msra.mxu0 %v254
    %427 = vmatpush.msra.mxu0 %v253
    %428 = vmatpush.msra.mxu0 %v252
    %429 = vmatpush.msra.mxu0 %v251
    %430 = vmatpush.msra.mxu0 %v250
    %431 = vmatmul.f32.gmra.mxu0 %v323
    %v432 = vpop.f32.mrf.mxu0
    %v433 = vadd.f32 %v413, %v432
    %434 = vdwg.mxu0
    %435 = vmatpush.msra.mxu0 %v281
    %436 = vmatpush.msra.mxu0 %v280
    %437 = vmatpush.msra.mxu0 %v279
    %438 = vmatpush.msra.mxu0 %v278
    %439 = vmatpush.msra.mxu0 %v277
    %440 = vmatpush.msra.mxu0 %v276
    %441 = vmatpush.msra.mxu0 %v275
    %442 = vmatpush.msra.mxu0 %v274
    %443 = vmatpush.msra.mxu0 %v273
    %444 = vmatpush.msra.mxu0 %v272
    %445 = vmatpush.msra.mxu0 %v271
    %446 = vmatpush.msra.mxu0 %v270
    %447 = vmatpush.msra.mxu0 %v269
    %448 = vmatpush.msra.mxu0 %v268
    %449 = vmatpush.msra.mxu0 %v267
    %450 = vmatpush.msra.mxu0 %v266
    %451 = vmatmul.f32.gmra.mxu0 %v324
    %v452 = vpop.f32.mrf.mxu0
    %v453 = vadd.f32 %v433, %v452
    %454 = vdwg.mxu0
    %455 = vmatpush.msra.mxu0 %v297
    %456 = vmatpush.msra.mxu0 %v296
    %457 = vmatpush.msra.mxu0 %v295
    %458 = vmatpush.msra.mxu0 %v294
    %459 = vmatpush.msra.mxu0 %v293
    %460 = vmatpush.msra.mxu0 %v292
    %461 = vmatpush.msra.mxu0 %v291
    %462 = vmatpush.msra.mxu0 %v290
    %463 = vmatpush.msra.mxu0 %v289
    %464 = vmatpush.msra.mxu0 %v288
    %465 = vmatpush.msra.mxu0 %v287
    %466 = vmatpush.msra.mxu0 %v286
    %467 = vmatpush.msra.mxu0 %v285
    %468 = vmatpush.msra.mxu0 %v284
    %469 = vmatpush.msra.mxu0 %v283
    %470 = vmatpush.msra.mxu0 %v282
    %471 = vmatmul.f32.gmra.mxu0 %v325
    %v472 = vpop.f32.mrf.mxu0
    %v473 = vadd.f32 %v453, %v472
    %474 = vdwg.mxu0
    %475 = vmatpush.msra.mxu0 %v313
    %476 = vmatpush.msra.mxu0 %v312
    %477 = vmatpush.msra.mxu0 %v311
    %478 = vmatpush.msra.mxu0 %v310
    %479 = vmatpush.msra.mxu0 %v309
    %480 = vmatpush.msra.mxu0 %v308
    %481 = vmatpush.msra.mxu0 %v307
    %482 = vmatpush.msra.mxu0 %v306
    %483 = vmatpush.msra.mxu0 %v305
    %484 = vmatpush.msra.mxu0 %v304
    %485 = vmatpush.msra.mxu0 %v303
    %486 = vmatpush.msra.mxu0 %v302
    %487 = vmatpush.msra.mxu0 %v301
    %488 = vmatpush.msra.mxu0 %v300
    %489 = vmatpush.msra.mxu0 %v299
    %490 = vmatpush.msra.mxu0 %v298
    %491 = vmatmul.f32.gmra.mxu0 %v326
    %v492 = vpop.f32.mrf.mxu0
    %v493 = vadd.f32 %v473, %v492
    %494 = vdwg.mxu0
    %v495 = vadd.f32 %v52, %v493
    %496 = vst [vmem:[#allocation7] sm:$0x3] %v495
    // Predicated region
    $region26: #{tpu_custom_call.1} parent=1 // pred_check
      %p497 = pneg %p45
    $region27: #{tpu_custom_call.1} parent=1 // pred_check_branch
      %499 = sbr.rel (%p497) target = $region29
    $region28: #{tpu_custom_call.1} parent=1 // pred_region
      %v500 = vld [vmem:[#allocation7] sm:$0x3]
      %v501 = vld [vmem:[%s2] sm:$0x1]
      %v503 = vperm.slane %v501, 0
      %v505 = vmul.f32 %v500, %v503
      %506 = vst [vmem:[#allocation7] sm:$0x3] %v505
    $region29: #{tpu_custom_call.1} parent=1 // pred_fallthru
      _
    // Predicated region
    $region30: #{tpu_custom_call.1} parent=1 // pred_check
      _
    $region31: #{tpu_custom_call.1} parent=1 // pred_check_branch
      %508 = sbr.rel (0) target = $region33
    $region32: #{tpu_custom_call.1} parent=1 // pred_region
      %510 = vsyncadd [#allocation4], 0
      %s512 = sshll.u32 [#allocation7], 4
      %s513 = int_to_ptr.vmem [resolvable:$true] %s512
      %s514 = sshll.u32 %s3, 4
      %s515 = int_to_ptr.hbm [resolvable:$true] %s514
      %517 = dma.vmem_to_hbm [thread:$0]  %s513, 32, %s515, [#allocation4]
    $region33: #{tpu_custom_call.1} parent=1 // pred_fallthru
      _
    // Predicated region
    $region34: #{tpu_custom_call.1} parent=1 // pred_check
      _
    $region35: #{tpu_custom_call.1} parent=1 // pred_check_branch
      %519 = sbr.rel (0) target = $region37
    $region36: #{tpu_custom_call.1} parent=1 // pred_region
      %521 = dma.done [#allocation4], 32
    $region37: #{tpu_custom_call.1} parent=1 // pred_fallthru
      _
    %522 = vsyncpa [#allocation3], 1
    %523 = vsyncpa [#allocation6], 1
    %524 = vsyncpa [#allocation4], 1

</llo_original>
